<compile_context>
chip_gen: v7x
topology: tpu7x:2x2x1
jax: 0.10.0
libtpu: 0.0.40
codegen_flags: <defaults>
</compile_context>

<pallas_src>
import functools
import math

import jax
import jax.numpy as jnp
from jax.experimental import pallas as pl
from jax.experimental.pallas import tpu as pltpu

NUM_HEADS = 4


def _dot_nt(a, b):
    """a @ b.T without materializing a transpose (contract last dims)."""
    return jax.lax.dot_general(a, b, (((1,), (1,)), ((), ())),
                               preferred_element_type=jnp.float32)


def _mha_kernel(x_ref, qkv_w_ref, qkv_b_ref, w_out_t_ref, b_out_ref,
                head_mask_ref, attn_bias_ref, o_ref,
                *, batch, seq_len, embed_dim, num_heads):
    """Single-invocation fused multi-head self-attention over all batch rows."""
    B, L, E, H = batch, seq_len, embed_dim, num_heads
    D = E // H
    M = B * L            # folded (batch * seq) rows
    scale = 1.0 / math.sqrt(D)

    x = x_ref[...]                                   # (M, E)

    # Q/K/V projections: three MXU pushes with wrapper-split transposed weights.
    q = jnp.dot(x, qkv_w_ref[0], preferred_element_type=jnp.float32) + qkv_b_ref[0]
    k = jnp.dot(x, qkv_w_ref[1], preferred_element_type=jnp.float32) + qkv_b_ref[1]
    v = jnp.dot(x, qkv_w_ref[2], preferred_element_type=jnp.float32) + qkv_b_ref[2]
    q = q * scale

    head_mask = head_mask_ref[...]                   # (S, E) 0/1 per-head column mask

    # Relayout-free head stacking: replicate the whole (M, E) block H times along
    # sublanes (aligned copies, no lane movement) and zero non-head columns.
    # Row block h*M + b*L + l corresponds to (head h, batch b, position l).
    qs = jnp.concatenate([q] * H, axis=0) * head_mask      # (S, E)
    ks = jnp.concatenate([k] * H, axis=0) * head_mask      # (S, E)
    vs = jnp.concatenate([v] * H, axis=0) * head_mask      # (S, E)

    # One masked attention for all (head, batch) blocks: disjoint head column supports
    # make cross-head scores zero; the precomputed block-diagonal bias (-1e30 off-block)
    # restricts each row's softmax to its own (head, batch) block.
    s = _dot_nt(qs, ks) + attn_bias_ref[...]               # (S, S)
    s = s - jnp.max(s, axis=-1, keepdims=True)
    p = jnp.exp(s)
    p = p / jnp.sum(p, axis=-1, keepdims=True)             # exact normalization
    ctx = jnp.dot(p, vs, preferred_element_type=jnp.float32)   # (S, E)

    # ctx row-block (h, b) is nonzero only in head h's columns, so one full-width
    # matmul with W_out^T yields each head's output contribution directly.
    out_rep = jnp.dot(ctx, w_out_t_ref[...], preferred_element_type=jnp.float32)  # (S, E)

    # Fold heads: sum H sublane-aligned (M, E) static slices (cheap addressing, no lane ops).
    out = out_rep[0:M, :]
    for h in range(1, H):
        out = out + out_rep[h * M:(h + 1) * M, :]
    out = out + b_out_ref[...]
    o_ref[...] = out.astype(o_ref.dtype)


def expert_attention(x, in_proj_weight, in_proj_bias, out_proj_weight, out_proj_bias,
                     *, num_heads=NUM_HEADS):
    """x: (B, L, E) float32. Weights follow PyTorch nn.MultiheadAttention conventions:
       in_proj_weight (3E, E), in_proj_bias (3E,), out_proj_weight (E, E), out_proj_bias (E,)."""
    B, L, E = x.shape
    H = num_heads
    assert E % H == 0
    D = E // H
    M = B * L
    S = H * M   # rows of the head/batch-stacked attention problem

    # Wrapper-side layout plumbing (zero in-kernel cost).
    x2d = x.reshape(M, E)
    qkv_w_t = in_proj_weight.reshape(3, E, E).transpose(0, 2, 1)   # (3, E, E): x @ W_i^T form
    qkv_b = in_proj_bias.reshape(3, 1, E)                          # (3, 1, E)
    w_out_t = out_proj_weight.T                                    # (E, E)
    b_out = out_proj_bias.reshape(1, E)                            # (1, E)

    # Precomputed (shape-only) masks: head column mask and block-diagonal additive bias.
    s_idx = jnp.arange(S)
    head_mask = (jnp.arange(E)[None, :] // D == (s_idx // M)[:, None]).astype(jnp.float32)  # (S, E)
    blk = s_idx // L
    attn_bias = jnp.where(blk[:, None] == blk[None, :],
                          jnp.float32(0.0), jnp.float32(-1e30))                             # (S, S)

    kernel = functools.partial(_mha_kernel, batch=B, seq_len=L, embed_dim=E, num_heads=H)

    vmem_spec = pl.BlockSpec(memory_space=pltpu.MemorySpace.VMEM)
    out2d = pl.pallas_call(
        kernel,
        out_shape=jax.ShapeDtypeStruct((M, E), x.dtype),
        in_specs=[vmem_spec] * 7,     # whole arrays resident in VMEM, no grid/pipeline
        out_specs=vmem_spec,
    )(x2d, qkv_w_t, qkv_b, w_out_t, b_out, head_mask, attn_bias)
    return out2d.reshape(B, L, E)


def _reference(x, w_in, b_in, w_out, b_out, num_heads=NUM_HEADS):
    """Pure-JAX reference mirroring torch.nn.MultiheadAttention forward (self-attn, no mask)."""
    B, L, E = x.shape
    D = E // num_heads
    hp = jax.lax.Precision.HIGHEST
    qkv = jnp.einsum('ble,fe->blf', x, w_in, precision=hp) + b_in          # (B, L, 3E)
    q, k, v = qkv[..., :E], qkv[..., E:2 * E], qkv[..., 2 * E:]
    q = q.reshape(B, L, num_heads, D).transpose(0, 2, 1, 3) / math.sqrt(D)
    k = k.reshape(B, L, num_heads, D).transpose(0, 2, 1, 3)
    v = v.reshape(B, L, num_heads, D).transpose(0, 2, 1, 3)
    s = jnp.einsum('bhqd,bhkd->bhqk', q, k, precision=hp)
    p = jax.nn.softmax(s, axis=-1)
    ctx = jnp.einsum('bhqk,bhkd->bhqd', p, v, precision=hp)
    ctx = ctx.transpose(0, 2, 1, 3).reshape(B, L, E)
    return jnp.einsum('ble,fe->blf', ctx, w_out, precision=hp) + b_out


if __name__ == "__main__":
    B, L, E = 2, 8, 32  # batch=2, seq=8, hidden=32 (hidden divisible by 4 heads)

    key = jax.random.PRNGKey(0)
    kx, k1, k2, k3, k4 = jax.random.split(key, 5)

    x = jax.random.normal(kx, (B, L, E), dtype=jnp.float32)

    # Deterministic parameter init (shapes follow nn.MultiheadAttention(hidden_dim, 4)).
    in_proj_weight = jax.random.normal(k1, (3 * E, E), dtype=jnp.float32) * (1.0 / math.sqrt(E))
    in_proj_bias = jax.random.normal(k2, (3 * E,), dtype=jnp.float32) * 0.01
    out_proj_weight = jax.random.normal(k3, (E, E), dtype=jnp.float32) * (1.0 / math.sqrt(E))
    out_proj_bias = jax.random.normal(k4, (E,), dtype=jnp.float32) * 0.01

    out = expert_attention(x, in_proj_weight, in_proj_bias, out_proj_weight, out_proj_bias)
    out = jax.block_until_ready(out)

    ref = _reference(x, in_proj_weight, in_proj_bias, out_proj_weight, out_proj_bias)
    assert out.shape == (B, L, E)
    # Exact softmax normalization restored -> 1e-4 tolerance (per perf review).
    assert jnp.allclose(out, ref, atol=1e-4, rtol=1e-4), "Pallas output mismatch vs reference"

    print("KERNEL_OK")
</pallas_src>

<mosaic_0001>
module attributes {stable_mosaic.version = 11 : i64} {
  func.func @_mha_kernel(%arg0: memref<16x32xf32, #tpu.memory_space<vmem>>, %arg1: memref<3x32x32xf32, #tpu.memory_space<vmem>>, %arg2: memref<3x1x32xf32, #tpu.memory_space<vmem>>, %arg3: memref<32x32xf32, #tpu.memory_space<vmem>>, %arg4: memref<1x32xf32, #tpu.memory_space<vmem>>, %arg5: memref<64x32xf32, #tpu.memory_space<vmem>>, %arg6: memref<64x64xf32, #tpu.memory_space<vmem>>, %arg7: memref<16x32xf32, #tpu.memory_space<vmem>>) attributes {dimension_semantics = [], scalar_prefetch = 0 : i64, scratch_operands = 0 : i64, tpu.core_type = #tpu.core_type<tc>} {
    %c0 = arith.constant 0 : index
    %c0_0 = arith.constant 0 : index
    %0 = vector.load %arg0[%c0, %c0_0] : memref<16x32xf32, #tpu.memory_space<vmem>>, vector<16x32xf32>
    %c0_1 = arith.constant 0 : index
    %c0_2 = arith.constant 0 : index
    %c0_3 = arith.constant 0 : index
    %1 = vector.load %arg1[%c0_1, %c0_2, %c0_3] : memref<3x32x32xf32, #tpu.memory_space<vmem>>, vector<1x32x32xf32>
    %2 = vector.shape_cast %1 : vector<1x32x32xf32> to vector<32x32xf32>
    %cst = arith.constant dense<0.000000e+00> : vector<16x32xf32>
    %3 = tpu.matmul %0, %2, %cst {dimension_numbers = #tpu.dot_dimension_numbers<[1], [0], [0], [1], [0, 0, 1, 1], [], []>} : vector<16x32xf32>, vector<32x32xf32>, vector<16x32xf32> -> vector<16x32xf32>
    %c0_4 = arith.constant 0 : index
    %c0_5 = arith.constant 0 : index
    %c0_6 = arith.constant 0 : index
    %4 = vector.load %arg2[%c0_4, %c0_5, %c0_6] : memref<3x1x32xf32, #tpu.memory_space<vmem>>, vector<1x1x32xf32>
    %5 = vector.shape_cast %4 : vector<1x1x32xf32> to vector<1x32xf32>
    %6 = vector.broadcast %5 : vector<1x32xf32> to vector<16x32xf32>
    %7 = arith.addf %3, %6 : vector<16x32xf32>
    %c1 = arith.constant 1 : index
    %c0_7 = arith.constant 0 : index
    %c0_8 = arith.constant 0 : index
    %8 = vector.load %arg1[%c1, %c0_7, %c0_8] : memref<3x32x32xf32, #tpu.memory_space<vmem>>, vector<1x32x32xf32>
    %9 = vector.shape_cast %8 : vector<1x32x32xf32> to vector<32x32xf32>
    %cst_9 = arith.constant dense<0.000000e+00> : vector<16x32xf32>
    %10 = tpu.matmul %0, %9, %cst_9 {dimension_numbers = #tpu.dot_dimension_numbers<[1], [0], [0], [1], [0, 0, 1, 1], [], []>} : vector<16x32xf32>, vector<32x32xf32>, vector<16x32xf32> -> vector<16x32xf32>
    %c1_10 = arith.constant 1 : index
    %c0_11 = arith.constant 0 : index
    %c0_12 = arith.constant 0 : index
    %11 = vector.load %arg2[%c1_10, %c0_11, %c0_12] : memref<3x1x32xf32, #tpu.memory_space<vmem>>, vector<1x1x32xf32>
    %12 = vector.shape_cast %11 : vector<1x1x32xf32> to vector<1x32xf32>
    %13 = vector.broadcast %12 : vector<1x32xf32> to vector<16x32xf32>
    %14 = arith.addf %10, %13 : vector<16x32xf32>
    %c2 = arith.constant 2 : index
    %c0_13 = arith.constant 0 : index
    %c0_14 = arith.constant 0 : index
    %15 = vector.load %arg1[%c2, %c0_13, %c0_14] : memref<3x32x32xf32, #tpu.memory_space<vmem>>, vector<1x32x32xf32>
    %16 = vector.shape_cast %15 : vector<1x32x32xf32> to vector<32x32xf32>
    %cst_15 = arith.constant dense<0.000000e+00> : vector<16x32xf32>
    %17 = tpu.matmul %0, %16, %cst_15 {dimension_numbers = #tpu.dot_dimension_numbers<[1], [0], [0], [1], [0, 0, 1, 1], [], []>} : vector<16x32xf32>, vector<32x32xf32>, vector<16x32xf32> -> vector<16x32xf32>
    %c2_16 = arith.constant 2 : index
    %c0_17 = arith.constant 0 : index
    %c0_18 = arith.constant 0 : index
    %18 = vector.load %arg2[%c2_16, %c0_17, %c0_18] : memref<3x1x32xf32, #tpu.memory_space<vmem>>, vector<1x1x32xf32>
    %19 = vector.shape_cast %18 : vector<1x1x32xf32> to vector<1x32xf32>
    %20 = vector.broadcast %19 : vector<1x32xf32> to vector<16x32xf32>
    %21 = arith.addf %17, %20 : vector<16x32xf32>
    %cst_19 = arith.constant 0.353553385 : f32
    %22 = vector.broadcast %cst_19 : f32 to vector<16x32xf32>
    %23 = arith.mulf %7, %22 : vector<16x32xf32>
    %c0_20 = arith.constant 0 : index
    %c0_21 = arith.constant 0 : index
    %24 = vector.load %arg5[%c0_20, %c0_21] : memref<64x32xf32, #tpu.memory_space<vmem>>, vector<64x32xf32>
    %25 = tpu.concatenate %23, %23, %23, %23 in 0 : vector<16x32xf32>, vector<16x32xf32>, vector<16x32xf32>, vector<16x32xf32> -> vector<64x32xf32>
    %26 = arith.mulf %25, %24 : vector<64x32xf32>
    %27 = tpu.concatenate %14, %14, %14, %14 in 0 : vector<16x32xf32>, vector<16x32xf32>, vector<16x32xf32>, vector<16x32xf32> -> vector<64x32xf32>
    %28 = arith.mulf %27, %24 : vector<64x32xf32>
    %29 = tpu.concatenate %21, %21, %21, %21 in 0 : vector<16x32xf32>, vector<16x32xf32>, vector<16x32xf32>, vector<16x32xf32> -> vector<64x32xf32>
    %30 = arith.mulf %29, %24 : vector<64x32xf32>
    %cst_22 = arith.constant dense<0.000000e+00> : vector<64x64xf32>
    %31 = tpu.matmul %26, %28, %cst_22 {dimension_numbers = #tpu.dot_dimension_numbers<[1], [1], [0], [0], [0, 0, 1, 0], [], []>} : vector<64x32xf32>, vector<64x32xf32>, vector<64x64xf32> -> vector<64x64xf32>
    %c0_23 = arith.constant 0 : index
    %c0_24 = arith.constant 0 : index
    %32 = vector.load %arg6[%c0_23, %c0_24] : memref<64x64xf32, #tpu.memory_space<vmem>>, vector<64x64xf32>
    %33 = arith.addf %31, %32 : vector<64x64xf32>
    %cst_25 = arith.constant dense<0xFF800000> : vector<64xf32>
    %34 = vector.multi_reduction <maximumf>, %33, %cst_25 [1] : vector<64x64xf32> to vector<64xf32>
    %35 = vector.shape_cast %34 : vector<64xf32> to vector<64x1xf32>
    %36 = vector.broadcast %35 : vector<64x1xf32> to vector<64x64xf32>
    %37 = arith.subf %33, %36 : vector<64x64xf32>
    %38 = math.exp %37 : vector<64x64xf32>
    %cst_26 = arith.constant dense<0.000000e+00> : vector<64xf32>
    %39 = vector.multi_reduction <add>, %38, %cst_26 [1] : vector<64x64xf32> to vector<64xf32>
    %40 = vector.shape_cast %39 : vector<64xf32> to vector<64x1xf32>
    %41 = vector.broadcast %40 : vector<64x1xf32> to vector<64x64xf32>
    %42 = arith.divf %38, %41 : vector<64x64xf32>
    %cst_27 = arith.constant dense<0.000000e+00> : vector<64x32xf32>
    %43 = tpu.matmul %42, %30, %cst_27 {dimension_numbers = #tpu.dot_dimension_numbers<[1], [0], [0], [1], [0, 0, 1, 1], [], []>} : vector<64x64xf32>, vector<64x32xf32>, vector<64x32xf32> -> vector<64x32xf32>
    %c0_28 = arith.constant 0 : index
    %c0_29 = arith.constant 0 : index
    %44 = vector.load %arg3[%c0_28, %c0_29] : memref<32x32xf32, #tpu.memory_space<vmem>>, vector<32x32xf32>
    %cst_30 = arith.constant dense<0.000000e+00> : vector<64x32xf32>
    %45 = tpu.matmul %43, %44, %cst_30 {dimension_numbers = #tpu.dot_dimension_numbers<[1], [0], [0], [1], [0, 0, 1, 1], [], []>} : vector<64x32xf32>, vector<32x32xf32>, vector<64x32xf32> -> vector<64x32xf32>
    %46 = vector.extract_strided_slice %45 {offsets = [0, 0], sizes = [16, 32], strides = [1, 1]} : vector<64x32xf32> to vector<16x32xf32>
    %47 = vector.extract_strided_slice %45 {offsets = [16, 0], sizes = [16, 32], strides = [1, 1]} : vector<64x32xf32> to vector<16x32xf32>
    %48 = arith.addf %46, %47 : vector<16x32xf32>
    %49 = vector.extract_strided_slice %45 {offsets = [32, 0], sizes = [16, 32], strides = [1, 1]} : vector<64x32xf32> to vector<16x32xf32>
    %50 = arith.addf %48, %49 : vector<16x32xf32>
    %51 = vector.extract_strided_slice %45 {offsets = [48, 0], sizes = [16, 32], strides = [1, 1]} : vector<64x32xf32> to vector<16x32xf32>
    %52 = arith.addf %50, %51 : vector<16x32xf32>
    %c0_31 = arith.constant 0 : index
    %c0_32 = arith.constant 0 : index
    %53 = vector.load %arg4[%c0_31, %c0_32] : memref<1x32xf32, #tpu.memory_space<vmem>>, vector<1x32xf32>
    %54 = vector.broadcast %53 : vector<1x32xf32> to vector<16x32xf32>
    %55 = arith.addf %52, %54 : vector<16x32xf32>
    %c0_33 = arith.constant 0 : index
    %c0_34 = arith.constant 0 : index
    %56 = vector.load %arg7[%c0_33, %c0_34] : memref<16x32xf32, #tpu.memory_space<vmem>>, vector<16x32xf32>
    tpu.vector_store %arg7[%c0_33, %c0_34], %55 {strides = array<i32>} : memref<16x32xf32, #tpu.memory_space<vmem>>, vector<16x32xf32>,
    return
  }
}

</mosaic_0001>

<llo_original>
// kernel: tpu_custom_call.1
$region0: #{tpu_custom_call.1}
  #allocation0 [shape = 'u32[]', space=smem, size = 0x4, offset = 0x4, fixed_abs, tag = 'smem constant byte address 0x4 - core index']
  #allocation1 [shape = 'u32[144,128]{1,0:T(1,128)}', space=vmem, size = 0x12000, scoped, tag = 'internal scratch']
  %s0 = inlined_call_operand.hbm [shape: f32[16,32], index: 0, kind: input, shape index: {}]
  %s1 = inlined_call_operand.vmem [shape: f32[3,32,32], index: 1, kind: input, shape index: {}]
  %s2 = inlined_call_operand.vmem [shape: f32[3,1,32], index: 2, kind: input, shape index: {}]
  %s3 = inlined_call_operand.hbm [shape: f32[32,32], index: 3, kind: input, shape index: {}]
  %s4 = inlined_call_operand.vmem [shape: f32[1,32], index: 4, kind: input, shape index: {}]
  %s5 = inlined_call_operand.vmem [shape: f32[64,32], index: 5, kind: input, shape index: {}]
  %s6 = inlined_call_operand.hbm [shape: f32[64,64], index: 6, kind: input, shape index: {}]
  %s7 = inlined_call_operand.hbm [shape: f32[16,32], index: 7, kind: output, shape index: {}]
  %s8 = sld [smem:[#allocation0]]
  $region50: #{tpu_custom_call.1} parent=0
    _
  %s10 = ssub.s32 1, %s8
  %s11 = scalar_select 0, %s10, %s8
  $region1: #{tpu_custom_call.1} parent=0
    #allocation2 [shape = 'u8[8192]{0}', space=vmem, size = 0x2000, scoped, tag = 'input window, operand 0, single buffered']
    #allocation3 [shape = 's32[1]{0}', space=sflag, size = 0x4, scoped, tag = 'scoped memory for tpu_custom_call.1']
    #allocation4 [shape = 's32[1]{0}', space=sflag, size = 0x4, scoped, tag = 'scoped memory for tpu_custom_call.1']
    #allocation5 [shape = 'u8[16384]{0}', space=vmem, size = 0x4000, scoped, tag = 'input window, operand 3, single buffered']
    #allocation6 [shape = 's32[1]{0}', space=sflag, size = 0x4, scoped, tag = 'scoped memory for tpu_custom_call.1']
    #allocation7 [shape = 'u8[32768]{0}', space=vmem, size = 0x8000, scoped, tag = 'input window, operand 6, single buffered']
    #allocation8 [shape = 'u8[8192]{0}', space=vmem, size = 0x2000, scoped, tag = 'output window, operand 0, single buffered']
    %12 = vsyncpa [#allocation3], 0
    %13 = vsyncpa [#allocation6], 0
    %14 = vsyncpa [#allocation4], 0
    // Predicated region
    $region2: #{tpu_custom_call.1} parent=1 // pred_check
      _
    $region3: #{tpu_custom_call.1} parent=1 // pred_check_branch
      %16 = sbr.rel (0) target = $region5
    $region4: #{tpu_custom_call.1} parent=1 // pred_region
      %s18 = ssub.s32 256, 256
      %19 = vsyncadd [#allocation3], %s18
      %s20 = sshll.u32 [#allocation2], 4
      %s21 = int_to_ptr.vmem [resolvable:$true] %s20
      %26 = dma.hbm_to_vmem [thread:$0]  %s0, 256, %s21, [#allocation3], 128, 128, 8
    $region5: #{tpu_custom_call.1} parent=1 // pred_fallthru
      _
    // Predicated region
    $region6: #{tpu_custom_call.1} parent=1 // pred_check
      _
    $region7: #{tpu_custom_call.1} parent=1 // pred_check_branch
      %28 = sbr.rel (0) target = $region9
    $region8: #{tpu_custom_call.1} parent=1 // pred_region
      _
    $region9: #{tpu_custom_call.1} parent=1 // pred_fallthru
      _
    // Predicated region
    $region10: #{tpu_custom_call.1} parent=1 // pred_check
      _
    $region11: #{tpu_custom_call.1} parent=1 // pred_check_branch
      %30 = sbr.rel (0) target = $region13
    $region12: #{tpu_custom_call.1} parent=1 // pred_region
      _
    $region13: #{tpu_custom_call.1} parent=1 // pred_fallthru
      _
    // Predicated region
    $region14: #{tpu_custom_call.1} parent=1 // pred_check
      _
    $region15: #{tpu_custom_call.1} parent=1 // pred_check_branch
      %32 = sbr.rel (0) target = $region17
    $region16: #{tpu_custom_call.1} parent=1 // pred_region
      %s34 = ssub.s32 512, 512
      %35 = vsyncadd [#allocation6], %s34
      %s36 = sshll.u32 [#allocation5], 4
      %s37 = int_to_ptr.vmem [resolvable:$true] %s36
      %42 = dma.hbm_to_vmem [thread:$0]  %s3, 512, %s37, [#allocation6], 128, 128, 8
    $region17: #{tpu_custom_call.1} parent=1 // pred_fallthru
      _
    // Predicated region
    $region18: #{tpu_custom_call.1} parent=1 // pred_check
      _
    $region19: #{tpu_custom_call.1} parent=1 // pred_check_branch
      %44 = sbr.rel (0) target = $region21
    $region20: #{tpu_custom_call.1} parent=1 // pred_region
      _
    $region21: #{tpu_custom_call.1} parent=1 // pred_fallthru
      _
    // Predicated region
    $region22: #{tpu_custom_call.1} parent=1 // pred_check
      _
    $region23: #{tpu_custom_call.1} parent=1 // pred_check_branch
      %46 = sbr.rel (0) target = $region25
    $region24: #{tpu_custom_call.1} parent=1 // pred_region
      _
    $region25: #{tpu_custom_call.1} parent=1 // pred_fallthru
      _
    // Predicated region
    $region26: #{tpu_custom_call.1} parent=1 // pred_check
      _
    $region27: #{tpu_custom_call.1} parent=1 // pred_check_branch
      %48 = sbr.rel (0) target = $region29
    $region28: #{tpu_custom_call.1} parent=1 // pred_region
      %s50 = ssub.s32 1024, 1024
      %51 = vsyncadd [#allocation6], %s50
      %s52 = sshll.u32 [#allocation7], 4
      %s53 = int_to_ptr.vmem [resolvable:$true] %s52
      %58 = dma.hbm_to_vmem [thread:$0]  %s6, 1024, %s53, [#allocation6], 128, 128, 8
    $region29: #{tpu_custom_call.1} parent=1 // pred_fallthru
      _
    // Predicated region
    $region30: #{tpu_custom_call.1} parent=1 // pred_check
      _
    $region31: #{tpu_custom_call.1} parent=1 // pred_check_branch
      %60 = sbr.rel (0) target = $region33
    $region32: #{tpu_custom_call.1} parent=1 // pred_region
      %61 = dma.done [#allocation3], 256
    $region33: #{tpu_custom_call.1} parent=1 // pred_fallthru
      _
    // Predicated region
    $region34: #{tpu_custom_call.1} parent=1 // pred_check
      _
    $region35: #{tpu_custom_call.1} parent=1 // pred_check_branch
      %63 = sbr.rel (0) target = $region37
    $region36: #{tpu_custom_call.1} parent=1 // pred_region
      %64 = dma.done [#allocation6], 512
    $region37: #{tpu_custom_call.1} parent=1 // pred_fallthru
      _
    // Predicated region
    $region38: #{tpu_custom_call.1} parent=1 // pred_check
      _
    $region39: #{tpu_custom_call.1} parent=1 // pred_check_branch
      %66 = sbr.rel (0) target = $region41
    $region40: #{tpu_custom_call.1} parent=1 // pred_region
      %67 = dma.done [#allocation6], 1024
    $region41: #{tpu_custom_call.1} parent=1 // pred_fallthru
      _
    %v68 = vld [vmem:[#allocation2] sm:$0xff]
    %v69 = vld [vmem:[#allocation2 + $0x8] sm:$0xff]
    %v70 = vld [vmem:[%s1] sm:$0xff]
    %v71 = vld [vmem:[%s1 + $0x8] sm:$0xff]
    %v72 = vld [vmem:[%s1 + $0x10] sm:$0xff]
    %v73 = vld [vmem:[%s1 + $0x18] sm:$0xff]
    %v74 = vld [vmem:[%s2] sm:$0x1]
    %v76 = vlaneseq
    %v77 = vshrl.u32 %v76, 7
    %v78 = vsub.s32 0, %v77
    %v79 = vrot.slane %v74, %v78
    %vm81 = vcmask 261120
    %v83 = vsel %vm81, %v68, 0
    %v86 = vsel %vm81, %v69, 0
    %88 = vmatprep.subr.mxu0 0.0
    %89 = vmatpush1.msra.mxu0 %v70
    %90 = vmatprep.subr.mxu0 0.0
    %91 = vmatpush1.msra.mxu0 %v71
    %92 = vmatprep.subr.mxu0 0.0
    %93 = vmatpush1.msra.mxu0 %v72
    %94 = vmatprep.subr.mxu0 0.0
    %95 = vmatpush1.msra.mxu0 %v73
    %96 = vmatprep.subr.mxu0 0.0
    %97 = vmatpush1.msra.mxu0 0.0
    %98 = vmatprep.subr.mxu0 0.0
    %99 = vmatpush1.msra.mxu0 0.0
    %100 = vmatprep.subr.mxu0 0.0
    %101 = vmatpush1.msra.mxu0 0.0
    %102 = vmatprep.subr.mxu0 0.0
    %103 = vmatpush1.msra.mxu0 0.0
    %104 = vmatprep.subr.mxu0 0.0
    %105 = vmatpush1.msra.mxu0 0.0
    %106 = vmatprep.subr.mxu0 0.0
    %107 = vmatpush1.msra.mxu0 0.0
    %108 = vmatprep.subr.mxu0 0.0
    %109 = vmatpush1.msra.mxu0 0.0
    %110 = vmatprep.subr.mxu0 0.0
    %111 = vmatpush1.msra.mxu0 0.0
    %112 = vmatprep.subr.mxu0 0.0
    %113 = vmatpush1.msra.mxu0 0.0
    %114 = vmatprep.subr.mxu0 0.0
    %115 = vmatpush1.msra.mxu0 0.0
    %116 = vmatprep.subr.mxu0 0.0
    %117 = vmatpush1.msra.mxu0 0.0
    %118 = vmatprep.subr.mxu0 0.0
    %119 = vmatpush1.msra.mxu0 0.0
    %120 = vmatprep.subr.mxu0 0.0
    %121 = vmatpush1.msra.mxu0 0.0
    %122 = vmatprep.subr.mxu0 0.0
    %123 = vmatpush1.msra.mxu0 0.0
    %124 = vmatprep.subr.mxu0 0.0
    %125 = vmatpush1.msra.mxu0 0.0
    %126 = vmatprep.subr.mxu0 0.0
    %127 = vmatpush1.msra.mxu0 0.0
    %128 = vmatprep.subr.mxu0 0.0
    %129 = vmatpush1.msra.mxu0 0.0
    %130 = vmatprep.subr.mxu0 0.0
    %131 = vmatpush1.msra.mxu0 0.0
    %132 = vmatprep.subr.mxu0 0.0
    %133 = vmatpush1.msra.mxu0 0.0
    %134 = vmatprep.subr.mxu0 0.0
    %135 = vmatpush1.msra.mxu0 0.0
    %136 = vmatprep.subr.mxu0 0.0
    %137 = vmatpush1.msra.mxu0 0.0
    %138 = vmatprep.subr.mxu0 0.0
    %139 = vmatpush1.msra.mxu0 0.0
    %140 = vmatprep.subr.mxu0 0.0
    %141 = vmatpush1.msra.mxu0 0.0
    %142 = vmatprep.subr.mxu0 0.0
    %143 = vmatpush1.msra.mxu0 0.0
    %144 = vmatprep.subr.mxu0 0.0
    %145 = vmatpush1.msra.mxu0 0.0
    %146 = vmatprep.subr.mxu0 0.0
    %147 = vmatpush1.msra.mxu0 0.0
    %148 = vmatprep.subr.mxu0 0.0
    %149 = vmatpush1.msra.mxu0 0.0
    %150 = vmatprep.subr.mxu0 0.0
    %151 = vmatpush1.msra.mxu0 0.0
    %152 = vmatprep.mubr.f32.mxu0 0.0
    %153 = vmatmul.mubr.f32.gmra.mrb[0].mxu0 %v83
    %v154 = vpop.f32.mrb[0].mxu0
    %v155 = vadd.f32 %v79, %v154
    %v156 = vpop.f32.mrb[0].mxu0
    %157 = vmatprep.mubr.f32.mxu0 0.0
    %158 = vmatmul.mubr.f32.gmra.mrb[0].mxu0 %v86
    %v159 = vpop.f32.mrb[0].mxu0
    %v160 = vadd.f32 %v79, %v159
    %v161 = vpop.f32.mrb[0].mxu0
    %162 = vdwg.mxu0
    %s163 = scalar_lea.vmem %s1, 32
    %v164 = vld [vmem:[%s163] sm:$0xff]
    %v165 = vld [vmem:[%s163 + $0x8] sm:$0xff]
    %v166 = vld [vmem:[%s163 + $0x10] sm:$0xff]
    %v167 = vld [vmem:[%s163 + $0x18] sm:$0xff]
    %s168 = scalar_lea.vmem %s2, 1
    %v169 = vld [vmem:[%s168] sm:$0x1]
    %v171 = vlaneseq
    %v172 = vshrl.u32 %v171, 7
    %v173 = vsub.s32 0, %v172
    %v174 = vrot.slane %v169, %v173
    %176 = vmatprep.subr.mxu0 0.0
    %177 = vmatpush1.msra.mxu0 %v164
    %178 = vmatprep.subr.mxu0 0.0
    %179 = vmatpush1.msra.mxu0 %v165
    %180 = vmatprep.subr.mxu0 0.0
    %181 = vmatpush1.msra.mxu0 %v166
    %182 = vmatprep.subr.mxu0 0.0
    %183 = vmatpush1.msra.mxu0 %v167
    %184 = vmatprep.subr.mxu0 0.0
    %185 = vmatpush1.msra.mxu0 0.0
    %186 = vmatprep.subr.mxu0 0.0
    %187 = vmatpush1.msra.mxu0 0.0
    %188 = vmatprep.subr.mxu0 0.0
    %189 = vmatpush1.msra.mxu0 0.0
    %190 = vmatprep.subr.mxu0 0.0
    %191 = vmatpush1.msra.mxu0 0.0
    %192 = vmatprep.subr.mxu0 0.0
    %193 = vmatpush1.msra.mxu0 0.0
    %194 = vmatprep.subr.mxu0 0.0
    %195 = vmatpush1.msra.mxu0 0.0
    %196 = vmatprep.subr.mxu0 0.0
    %197 = vmatpush1.msra.mxu0 0.0
    %198 = vmatprep.subr.mxu0 0.0
    %199 = vmatpush1.msra.mxu0 0.0
    %200 = vmatprep.subr.mxu0 0.0
    %201 = vmatpush1.msra.mxu0 0.0
    %202 = vmatprep.subr.mxu0 0.0
    %203 = vmatpush1.msra.mxu0 0.0
    %204 = vmatprep.subr.mxu0 0.0
    %205 = vmatpush1.msra.mxu0 0.0
    %206 = vmatprep.subr.mxu0 0.0
    %207 = vmatpush1.msra.mxu0 0.0
    %208 = vmatprep.subr.mxu0 0.0
    %209 = vmatpush1.msra.mxu0 0.0
    %210 = vmatprep.subr.mxu0 0.0
    %211 = vmatpush1.msra.mxu0 0.0
    %212 = vmatprep.subr.mxu0 0.0
    %213 = vmatpush1.msra.mxu0 0.0
    %214 = vmatprep.subr.mxu0 0.0
    %215 = vmatpush1.msra.mxu0 0.0
    %216 = vmatprep.subr.mxu0 0.0
    %217 = vmatpush1.msra.mxu0 0.0
    %218 = vmatprep.subr.mxu0 0.0
    %219 = vmatpush1.msra.mxu0 0.0
    %220 = vmatprep.subr.mxu0 0.0
    %221 = vmatpush1.msra.mxu0 0.0
    %222 = vmatprep.subr.mxu0 0.0
    %223 = vmatpush1.msra.mxu0 0.0
    %224 = vmatprep.subr.mxu0 0.0
    %225 = vmatpush1.msra.mxu0 0.0
    %226 = vmatprep.subr.mxu0 0.0
    %227 = vmatpush1.msra.mxu0 0.0
    %228 = vmatprep.subr.mxu0 0.0
    %229 = vmatpush1.msra.mxu0 0.0
    %230 = vmatprep.subr.mxu0 0.0
    %231 = vmatpush1.msra.mxu0 0.0
    %232 = vmatprep.subr.mxu0 0.0
    %233 = vmatpush1.msra.mxu0 0.0
    %234 = vmatprep.subr.mxu0 0.0
    %235 = vmatpush1.msra.mxu0 0.0
    %236 = vmatprep.subr.mxu0 0.0
    %237 = vmatpush1.msra.mxu0 0.0
    %238 = vmatprep.subr.mxu0 0.0
    %239 = vmatpush1.msra.mxu0 0.0
    %240 = vmatprep.mubr.f32.mxu0 0.0
    %241 = vmatmul.mubr.f32.gmra.mrb[0].mxu0 %v83
    %v242 = vpop.f32.mrb[0].mxu0
    %v243 = vadd.f32 %v174, %v242
    %v244 = vpop.f32.mrb[0].mxu0
    %245 = vmatprep.mubr.f32.mxu0 0.0
    %246 = vmatmul.mubr.f32.gmra.mrb[0].mxu0 %v86
    %v247 = vpop.f32.mrb[0].mxu0
    %v248 = vadd.f32 %v174, %v247
    %v249 = vpop.f32.mrb[0].mxu0
    %250 = vdwg.mxu0
    %s251 = scalar_lea.vmem %s1, 64
    %v252 = vld [vmem:[%s251] sm:$0xff]
    %v253 = vld [vmem:[%s251 + $0x8] sm:$0xff]
    %v254 = vld [vmem:[%s251 + $0x10] sm:$0xff]
    %v255 = vld [vmem:[%s251 + $0x18] sm:$0xff]
    %s256 = scalar_lea.vmem %s2, 2
    %v257 = vld [vmem:[%s256] sm:$0x1]
    %v259 = vlaneseq
    %v260 = vshrl.u32 %v259, 7
    %v261 = vsub.s32 0, %v260
    %v262 = vrot.slane %v257, %v261
    %264 = vmatprep.subr.mxu0 0.0
    %265 = vmatpush1.msra.mxu0 %v252
    %266 = vmatprep.subr.mxu0 0.0
    %267 = vmatpush1.msra.mxu0 %v253
    %268 = vmatprep.subr.mxu0 0.0
    %269 = vmatpush1.msra.mxu0 %v254
    %270 = vmatprep.subr.mxu0 0.0
    %271 = vmatpush1.msra.mxu0 %v255
    %272 = vmatprep.subr.mxu0 0.0
    %273 = vmatpush1.msra.mxu0 0.0
    %274 = vmatprep.subr.mxu0 0.0
    %275 = vmatpush1.msra.mxu0 0.0
    %276 = vmatprep.subr.mxu0 0.0
    %277 = vmatpush1.msra.mxu0 0.0
    %278 = vmatprep.subr.mxu0 0.0
    %279 = vmatpush1.msra.mxu0 0.0
    %280 = vmatprep.subr.mxu0 0.0
    %281 = vmatpush1.msra.mxu0 0.0
    %282 = vmatprep.subr.mxu0 0.0
    %283 = vmatpush1.msra.mxu0 0.0
    %284 = vmatprep.subr.mxu0 0.0
    %285 = vmatpush1.msra.mxu0 0.0
    %286 = vmatprep.subr.mxu0 0.0
    %287 = vmatpush1.msra.mxu0 0.0
    %288 = vmatprep.subr.mxu0 0.0
    %289 = vmatpush1.msra.mxu0 0.0
    %290 = vmatprep.subr.mxu0 0.0
    %291 = vmatpush1.msra.mxu0 0.0
    %292 = vmatprep.subr.mxu0 0.0
    %293 = vmatpush1.msra.mxu0 0.0
    %294 = vmatprep.subr.mxu0 0.0
    %295 = vmatpush1.msra.mxu0 0.0
    %296 = vmatprep.subr.mxu0 0.0
    %297 = vmatpush1.msra.mxu0 0.0
    %298 = vmatprep.subr.mxu0 0.0
    %299 = vmatpush1.msra.mxu0 0.0
    %300 = vmatprep.subr.mxu0 0.0
    %301 = vmatpush1.msra.mxu0 0.0
    %302 = vmatprep.subr.mxu0 0.0
    %303 = vmatpush1.msra.mxu0 0.0
    %304 = vmatprep.subr.mxu0 0.0
    %305 = vmatpush1.msra.mxu0 0.0
    %306 = vmatprep.subr.mxu0 0.0
    %307 = vmatpush1.msra.mxu0 0.0
    %308 = vmatprep.subr.mxu0 0.0
    %309 = vmatpush1.msra.mxu0 0.0
    %310 = vmatprep.subr.mxu0 0.0
    %311 = vmatpush1.msra.mxu0 0.0
    %312 = vmatprep.subr.mxu0 0.0
    %313 = vmatpush1.msra.mxu0 0.0
    %314 = vmatprep.subr.mxu0 0.0
    %315 = vmatpush1.msra.mxu0 0.0
    %316 = vmatprep.subr.mxu0 0.0
    %317 = vmatpush1.msra.mxu0 0.0
    %318 = vmatprep.subr.mxu0 0.0
    %319 = vmatpush1.msra.mxu0 0.0
    %320 = vmatprep.subr.mxu0 0.0
    %321 = vmatpush1.msra.mxu0 0.0
    %322 = vmatprep.subr.mxu0 0.0
    %323 = vmatpush1.msra.mxu0 0.0
    %324 = vmatprep.subr.mxu0 0.0
    %325 = vmatpush1.msra.mxu0 0.0
    %326 = vmatprep.subr.mxu0 0.0
    %327 = vmatpush1.msra.mxu0 0.0
    %328 = vmatprep.mubr.f32.mxu0 0.0
    %329 = vmatmul.mubr.f32.gmra.mrb[0].mxu0 %v83
    %v330 = vpop.f32.mrb[0].mxu0
    %v331 = vadd.f32 %v262, %v330
    %v332 = vpop.f32.mrb[0].mxu0
    %333 = vmatprep.mubr.f32.mxu0 0.0
    %334 = vmatmul.mubr.f32.gmra.mrb[0].mxu0 %v86
    %v335 = vpop.f32.mrb[0].mxu0
    %v336 = vadd.f32 %v262, %v335
    %v337 = vpop.f32.mrb[0].mxu0
    %338 = vdwg.mxu0
    %v339 = vmul.f32 %v155, 0.35355338
    %v340 = vmul.f32 %v160, 0.35355338
    %v341 = vld [vmem:[%s5] sm:$0xff]
    %v342 = vld [vmem:[%s5 + $0x8] sm:$0xff]
    %v343 = vld [vmem:[%s5 + $0x10] sm:$0xff]
    %v344 = vld [vmem:[%s5 + $0x18] sm:$0xff]
    %v345 = vld [vmem:[%s5 + $0x20] sm:$0xff]
    %v346 = vld [vmem:[%s5 + $0x28] sm:$0xff]
    %v347 = vld [vmem:[%s5 + $0x30] sm:$0xff]
    %v348 = vld [vmem:[%s5 + $0x38] sm:$0xff]
    %v349 = vmul.f32 %v339, %v341
    %v350 = vmul.f32 %v340, %v342
    %v351 = vmul.f32 %v339, %v343
    %v352 = vmul.f32 %v340, %v344
    %v353 = vmul.f32 %v339, %v345
    %v354 = vmul.f32 %v340, %v346
    %v355 = vmul.f32 %v339, %v347
    %v356 = vmul.f32 %v340, %v348
    %v357 = vmul.f32 %v243, %v341
    %v358 = vmul.f32 %v248, %v342
    %v359 = vmul.f32 %v243, %v343
    %v360 = vmul.f32 %v248, %v344
    %v361 = vmul.f32 %v243, %v345
    %v362 = vmul.f32 %v248, %v346
    %v363 = vmul.f32 %v243, %v347
    %v364 = vmul.f32 %v248, %v348
    %v365 = vmul.f32 %v331, %v341
    %v366 = vmul.f32 %v336, %v342
    %v367 = vmul.f32 %v331, %v343
    %v368 = vmul.f32 %v336, %v344
    %v369 = vmul.f32 %v331, %v345
    %v370 = vmul.f32 %v336, %v346
    %v371 = vmul.f32 %v331, %v347
    %v372 = vmul.f32 %v336, %v348
    %v373 = vld [vmem:[#allocation7] sm:$0xff]
    %v374 = vld [vmem:[#allocation7 + $0x8] sm:$0xff]
    %v375 = vld [vmem:[#allocation7 + $0x10] sm:$0xff]
    %v376 = vld [vmem:[#allocation7 + $0x18] sm:$0xff]
    %v377 = vld [vmem:[#allocation7 + $0x20] sm:$0xff]
    %v378 = vld [vmem:[#allocation7 + $0x28] sm:$0xff]
    %v379 = vld [vmem:[#allocation7 + $0x30] sm:$0xff]
    %v380 = vld [vmem:[#allocation7 + $0x38] sm:$0xff]
    %v382 = vsel %vm81, %v349, 0
    %v385 = vsel %vm81, %v350, 0
    %v388 = vsel %vm81, %v351, 0
    %v391 = vsel %vm81, %v352, 0
    %v394 = vsel %vm81, %v353, 0
    %v397 = vsel %vm81, %v354, 0
    %v400 = vsel %vm81, %v355, 0
    %v403 = vsel %vm81, %v356, 0
    %v406 = vsel %vm81, %v357, 0
    %v409 = vsel %vm81, %v358, 0
    %v412 = vsel %vm81, %v359, 0
    %v415 = vsel %vm81, %v360, 0
    %v418 = vsel %vm81, %v361, 0
    %v421 = vsel %vm81, %v362, 0
    %v424 = vsel %vm81, %v363, 0
    %v427 = vsel %vm81, %v364, 0
    %429 = vmatprep.subr.mxu0 0.0
    %430 = vmatpush1.xpose.msra.mxu0 %v406
    %431 = vmatprep.subr.mxu0 0.0
    %432 = vmatpush1.xpose.msra.mxu0 %v409
    %433 = vmatprep.subr.mxu0 0.0
    %434 = vmatpush1.xpose.msra.mxu0 %v412
    %435 = vmatprep.subr.mxu0 0.0
    %436 = vmatpush1.xpose.msra.mxu0 %v415
    %437 = vmatprep.subr.mxu0 0.0
    %438 = vmatpush1.xpose.msra.mxu0 %v418
    %439 = vmatprep.subr.mxu0 0.0
    %440 = vmatpush1.xpose.msra.mxu0 %v421
    %441 = vmatprep.subr.mxu0 0.0
    %442 = vmatpush1.xpose.msra.mxu0 %v424
    %443 = vmatprep.subr.mxu0 0.0
    %444 = vmatpush1.xpose.msra.mxu0 %v427
    %445 = vmatprep.subr.mxu0 0.0
    %446 = vmatpush1.xpose.msra.mxu0 0.0
    %447 = vmatprep.subr.mxu0 0.0
    %448 = vmatpush1.xpose.msra.mxu0 0.0
    %449 = vmatprep.subr.mxu0 0.0
    %450 = vmatpush1.xpose.msra.mxu0 0.0
    %451 = vmatprep.subr.mxu0 0.0
    %452 = vmatpush1.xpose.msra.mxu0 0.0
    %453 = vmatprep.subr.mxu0 0.0
    %454 = vmatpush1.xpose.msra.mxu0 0.0
    %455 = vmatprep.subr.mxu0 0.0
    %456 = vmatpush1.xpose.msra.mxu0 0.0
    %457 = vmatprep.subr.mxu0 0.0
    %458 = vmatpush1.xpose.msra.mxu0 0.0
    %459 = vmatprep.subr.mxu0 0.0
    %460 = vmatpush1.xpose.msra.mxu0 0.0
    %461 = vmatprep.subr.mxu0 0.0
    %462 = vmatpush1.xpose.msra.mxu0 0.0
    %463 = vmatprep.subr.mxu0 0.0
    %464 = vmatpush1.xpose.msra.mxu0 0.0
    %465 = vmatprep.subr.mxu0 0.0
    %466 = vmatpush1.xpose.msra.mxu0 0.0
    %467 = vmatprep.subr.mxu0 0.0
    %468 = vmatpush1.xpose.msra.mxu0 0.0
    %469 = vmatprep.subr.mxu0 0.0
    %470 = vmatpush1.xpose.msra.mxu0 0.0
    %471 = vmatprep.subr.mxu0 0.0
    %472 = vmatpush1.xpose.msra.mxu0 0.0
    %473 = vmatprep.subr.mxu0 0.0
    %474 = vmatpush1.xpose.msra.mxu0 0.0
    %475 = vmatprep.subr.mxu0 0.0
    %476 = vmatpush1.xpose.msra.mxu0 0.0
    %477 = vmatprep.subr.mxu0 0.0
    %478 = vmatpush1.xpose.msra.mxu0 0.0
    %479 = vmatprep.subr.mxu0 0.0
    %480 = vmatpush1.xpose.msra.mxu0 0.0
    %481 = vmatprep.subr.mxu0 0.0
    %482 = vmatpush1.xpose.msra.mxu0 0.0
    %483 = vmatprep.subr.mxu0 0.0
    %484 = vmatpush1.xpose.msra.mxu0 0.0
    %485 = vmatprep.subr.mxu0 0.0
    %486 = vmatpush1.xpose.msra.mxu0 0.0
    %487 = vmatprep.subr.mxu0 0.0
    %488 = vmatpush1.xpose.msra.mxu0 0.0
    %489 = vmatprep.subr.mxu0 0.0
    %490 = vmatpush1.xpose.msra.mxu0 0.0
    %491 = vmatprep.subr.mxu0 0.0
    %492 = vmatpush1.xpose.msra.mxu0 0.0
    %493 = vmatprep.mubr.f32.mxu0 0.0
    %494 = vmatmul.mubr.f32.gmra.mrb[0].mxu0 %v382
    %v495 = vpop.f32.mrb[0].mxu0
    %v496 = vadd.f32 %v373, %v495
    %v497 = vpop.f32.mrb[0].mxu0
    %498 = vmatprep.mubr.f32.mxu0 0.0
    %499 = vmatmul.mubr.f32.gmra.mrb[0].mxu0 %v385
    %v500 = vpop.f32.mrb[0].mxu0
    %v501 = vadd.f32 %v374, %v500
    %v502 = vpop.f32.mrb[0].mxu0
    %503 = vmatprep.mubr.f32.mxu0 0.0
    %504 = vmatmul.mubr.f32.gmra.mrb[0].mxu0 %v388
    %v505 = vpop.f32.mrb[0].mxu0
    %v506 = vadd.f32 %v375, %v505
    %v507 = vpop.f32.mrb[0].mxu0
    %508 = vmatprep.mubr.f32.mxu0 0.0
    %509 = vmatmul.mubr.f32.gmra.mrb[0].mxu0 %v391
    %v510 = vpop.f32.mrb[0].mxu0
    %v511 = vadd.f32 %v376, %v510
    %v512 = vpop.f32.mrb[0].mxu0
    %513 = vmatprep.mubr.f32.mxu0 0.0
    %514 = vmatmul.mubr.f32.gmra.mrb[0].mxu0 %v394
    %v515 = vpop.f32.mrb[0].mxu0
    %v516 = vadd.f32 %v377, %v515
    %v517 = vpop.f32.mrb[0].mxu0
    %518 = vmatprep.mubr.f32.mxu0 0.0
    %519 = vmatmul.mubr.f32.gmra.mrb[0].mxu0 %v397
    %v520 = vpop.f32.mrb[0].mxu0
    %v521 = vadd.f32 %v378, %v520
    %v522 = vpop.f32.mrb[0].mxu0
    %523 = vmatprep.mubr.f32.mxu0 0.0
    %524 = vmatmul.mubr.f32.gmra.mrb[0].mxu0 %v400
    %v525 = vpop.f32.mrb[0].mxu0
    %v526 = vadd.f32 %v379, %v525
    %v527 = vpop.f32.mrb[0].mxu0
    %528 = vmatprep.mubr.f32.mxu0 0.0
    %529 = vmatmul.mubr.f32.gmra.mrb[0].mxu0 %v403
    %v530 = vpop.f32.mrb[0].mxu0
    %v531 = vadd.f32 %v380, %v530
    %v532 = vpop.f32.mrb[0].mxu0
    %533 = vdwg.mxu0
    %vm534 = vcmask 523264
    %v535 = vsel %vm534, %v496, -inf
    %536 = vmax.xlane.f32.xlu0 %v535
    %v537 = vpop.xlane.xlu0 %536
    %v538 = vsel %vm534, %v501, -inf
    %539 = vmax.xlane.f32.xlu0 %v538
    %v540 = vpop.xlane.xlu0 %539
    %v541 = vsel %vm534, %v506, -inf
    %542 = vmax.xlane.f32.xlu0 %v541
    %v543 = vpop.xlane.xlu0 %542
    %v544 = vsel %vm534, %v511, -inf
    %545 = vmax.xlane.f32.xlu0 %v544
    %v546 = vpop.xlane.xlu0 %545
    %v547 = vsel %vm534, %v516, -inf
    %548 = vmax.xlane.f32.xlu0 %v547
    %v549 = vpop.xlane.xlu0 %548
    %v550 = vsel %vm534, %v521, -inf
    %551 = vmax.xlane.f32.xlu0 %v550
    %v552 = vpop.xlane.xlu0 %551
    %v553 = vsel %vm534, %v526, -inf
    %554 = vmax.xlane.f32.xlu0 %v553
    %v555 = vpop.xlane.xlu0 %554
    %v556 = vsel %vm534, %v531, -inf
    %557 = vmax.xlane.f32.xlu0 %v556
    %v558 = vpop.xlane.xlu0 %557
    %v559 = vsub.f32 %v496, %v537
    %v560 = vsub.f32 %v501, %v540
    %v561 = vsub.f32 %v506, %v543
    %v562 = vsub.f32 %v511, %v546
    %v563 = vsub.f32 %v516, %v549
    %v564 = vsub.f32 %v521, %v552
    %v565 = vsub.f32 %v526, %v555
    %v566 = vsub.f32 %v531, %v558
    %v567 = vmul.f32 %v559, 1.442695
    %v568 = vpow.pop %v567
    %v569 = vmul.f32 %v560, 1.442695
    %v570 = vpow.pop %v569
    %v571 = vmul.f32 %v561, 1.442695
    %v572 = vpow.pop %v571
    %v573 = vmul.f32 %v562, 1.442695
    %v574 = vpow.pop %v573
    %v575 = vmul.f32 %v563, 1.442695
    %v576 = vpow.pop %v575
    %v577 = vmul.f32 %v564, 1.442695
    %v578 = vpow.pop %v577
    %v579 = vmul.f32 %v565, 1.442695
    %v580 = vpow.pop %v579
    %v581 = vmul.f32 %v566, 1.442695
    %v582 = vpow.pop %v581
    %v583 = vsel %vm534, %v568, 0.0
    %584 = vadd.xlane.f32.xlu0 %v583
    %v585 = vpop.xlane.xlu0 %584
    %v586 = vsel %vm534, %v570, 0.0
    %587 = vadd.xlane.f32.xlu0 %v586
    %v588 = vpop.xlane.xlu0 %587
    %v589 = vsel %vm534, %v572, 0.0
    %590 = vadd.xlane.f32.xlu0 %v589
    %v591 = vpop.xlane.xlu0 %590
    %v592 = vsel %vm534, %v574, 0.0
    %593 = vadd.xlane.f32.xlu0 %v592
    %v594 = vpop.xlane.xlu0 %593
    %v595 = vsel %vm534, %v576, 0.0
    %596 = vadd.xlane.f32.xlu0 %v595
    %v597 = vpop.xlane.xlu0 %596
    %v598 = vsel %vm534, %v578, 0.0
    %599 = vadd.xlane.f32.xlu0 %v598
    %v600 = vpop.xlane.xlu0 %599
    %v601 = vsel %vm534, %v580, 0.0
    %602 = vadd.xlane.f32.xlu0 %v601
    %v603 = vpop.xlane.xlu0 %602
    %v604 = vsel %vm534, %v582, 0.0
    %605 = vadd.xlane.f32.xlu0 %v604
    %v606 = vpop.xlane.xlu0 %605
    %v607 = vrcp.pop %v585
    %v608 = vmul.f32 %v568, %v607
    %v609 = vrcp.pop %v588
    %v610 = vmul.f32 %v570, %v609
    %v611 = vrcp.pop %v591
    %v612 = vmul.f32 %v572, %v611
    %v613 = vrcp.pop %v594
    %v614 = vmul.f32 %v574, %v613
    %v615 = vrcp.pop %v597
    %v616 = vmul.f32 %v576, %v615
    %v617 = vrcp.pop %v600
    %v618 = vmul.f32 %v578, %v617
    %v619 = vrcp.pop %v603
    %v620 = vmul.f32 %v580, %v619
    %v621 = vrcp.pop %v606
    %v622 = vmul.f32 %v582, %v621
    %v624 = vsel %vm534, %v608, 0
    %v627 = vsel %vm534, %v610, 0
    %v630 = vsel %vm534, %v612, 0
    %v633 = vsel %vm534, %v614, 0
    %v636 = vsel %vm534, %v616, 0
    %v639 = vsel %vm534, %v618, 0
    %v642 = vsel %vm534, %v620, 0
    %v645 = vsel %vm534, %v622, 0
    %647 = vmatprep.subr.mxu0 0.0
    %648 = vmatpush1.msra.mxu0 %v365
    %649 = vmatprep.subr.mxu0 0.0
    %650 = vmatpush1.msra.mxu0 %v366
    %651 = vmatprep.subr.mxu0 0.0
    %652 = vmatpush1.msra.mxu0 %v367
    %653 = vmatprep.subr.mxu0 0.0
    %654 = vmatpush1.msra.mxu0 %v368
    %655 = vmatprep.subr.mxu0 0.0
    %656 = vmatpush1.msra.mxu0 %v369
    %657 = vmatprep.subr.mxu0 0.0
    %658 = vmatpush1.msra.mxu0 %v370
    %659 = vmatprep.subr.mxu0 0.0
    %660 = vmatpush1.msra.mxu0 %v371
    %661 = vmatprep.subr.mxu0 0.0
    %662 = vmatpush1.msra.mxu0 %v372
    %663 = vmatprep.subr.mxu0 0.0
    %664 = vmatpush1.msra.mxu0 0.0
    %665 = vmatprep.subr.mxu0 0.0
    %666 = vmatpush1.msra.mxu0 0.0
    %667 = vmatprep.subr.mxu0 0.0
    %668 = vmatpush1.msra.mxu0 0.0
    %669 = vmatprep.subr.mxu0 0.0
    %670 = vmatpush1.msra.mxu0 0.0
    %671 = vmatprep.subr.mxu0 0.0
    %672 = vmatpush1.msra.mxu0 0.0
    %673 = vmatprep.subr.mxu0 0.0
    %674 = vmatpush1.msra.mxu0 0.0
    %675 = vmatprep.subr.mxu0 0.0
    %676 = vmatpush1.msra.mxu0 0.0
    %677 = vmatprep.subr.mxu0 0.0
    %678 = vmatpush1.msra.mxu0 0.0
    %679 = vmatprep.subr.mxu0 0.0
    %680 = vmatpush1.msra.mxu0 0.0
    %681 = vmatprep.subr.mxu0 0.0
    %682 = vmatpush1.msra.mxu0 0.0
    %683 = vmatprep.subr.mxu0 0.0
    %684 = vmatpush1.msra.mxu0 0.0
    %685 = vmatprep.subr.mxu0 0.0
    %686 = vmatpush1.msra.mxu0 0.0
    %687 = vmatprep.subr.mxu0 0.0
    %688 = vmatpush1.msra.mxu0 0.0
    %689 = vmatprep.subr.mxu0 0.0
    %690 = vmatpush1.msra.mxu0 0.0
    %691 = vmatprep.subr.mxu0 0.0
    %692 = vmatpush1.msra.mxu0 0.0
    %693 = vmatprep.subr.mxu0 0.0
    %694 = vmatpush1.msra.mxu0 0.0
    %695 = vmatprep.subr.mxu0 0.0
    %696 = vmatpush1.msra.mxu0 0.0
    %697 = vmatprep.subr.mxu0 0.0
    %698 = vmatpush1.msra.mxu0 0.0
    %699 = vmatprep.subr.mxu0 0.0
    %700 = vmatpush1.msra.mxu0 0.0
    %701 = vmatprep.subr.mxu0 0.0
    %702 = vmatpush1.msra.mxu0 0.0
    %703 = vmatprep.subr.mxu0 0.0
    %704 = vmatpush1.msra.mxu0 0.0
    %705 = vmatprep.subr.mxu0 0.0
    %706 = vmatpush1.msra.mxu0 0.0
    %707 = vmatprep.subr.mxu0 0.0
    %708 = vmatpush1.msra.mxu0 0.0
    %709 = vmatprep.subr.mxu0 0.0
    %710 = vmatpush1.msra.mxu0 0.0
    %711 = vmatprep.mubr.f32.mxu0 0.0
    %712 = vmatmul.mubr.f32.gmra.mrb[0].mxu0 %v624
    %v713 = vpop.f32.mrb[0].mxu0
    %v714 = vadd.f32 0.0, %v713
    %v715 = vpop.f32.mrb[0].mxu0
    %716 = vmatprep.mubr.f32.mxu0 0.0
    %717 = vmatmul.mubr.f32.gmra.mrb[0].mxu0 %v627
    %v718 = vpop.f32.mrb[0].mxu0
    %v719 = vadd.f32 0.0, %v718
    %v720 = vpop.f32.mrb[0].mxu0
    %721 = vmatprep.mubr.f32.mxu0 0.0
    %722 = vmatmul.mubr.f32.gmra.mrb[0].mxu0 %v630
    %v723 = vpop.f32.mrb[0].mxu0
    %v724 = vadd.f32 0.0, %v723
    %v725 = vpop.f32.mrb[0].mxu0
    %726 = vmatprep.mubr.f32.mxu0 0.0
    %727 = vmatmul.mubr.f32.gmra.mrb[0].mxu0 %v633
    %v728 = vpop.f32.mrb[0].mxu0
    %v729 = vadd.f32 0.0, %v728
    %v730 = vpop.f32.mrb[0].mxu0
    %731 = vmatprep.mubr.f32.mxu0 0.0
    %732 = vmatmul.mubr.f32.gmra.mrb[0].mxu0 %v636
    %v733 = vpop.f32.mrb[0].mxu0
    %v734 = vadd.f32 0.0, %v733
    %v735 = vpop.f32.mrb[0].mxu0
    %736 = vmatprep.mubr.f32.mxu0 0.0
    %737 = vmatmul.mubr.f32.gmra.mrb[0].mxu0 %v639
    %v738 = vpop.f32.mrb[0].mxu0
    %v739 = vadd.f32 0.0, %v738
    %v740 = vpop.f32.mrb[0].mxu0
    %741 = vmatprep.mubr.f32.mxu0 0.0
    %742 = vmatmul.mubr.f32.gmra.mrb[0].mxu0 %v642
    %v743 = vpop.f32.mrb[0].mxu0
    %v744 = vadd.f32 0.0, %v743
    %v745 = vpop.f32.mrb[0].mxu0
    %746 = vmatprep.mubr.f32.mxu0 0.0
    %747 = vmatmul.mubr.f32.gmra.mrb[0].mxu0 %v645
    %v748 = vpop.f32.mrb[0].mxu0
    %v749 = vadd.f32 0.0, %v748
    %v750 = vpop.f32.mrb[0].mxu0
    %751 = vdwg.mxu0
    %v752 = vld [vmem:[#allocation5] sm:$0xff]
    %v753 = vld [vmem:[#allocation5 + $0x8] sm:$0xff]
    %v754 = vld [vmem:[#allocation5 + $0x10] sm:$0xff]
    %v755 = vld [vmem:[#allocation5 + $0x18] sm:$0xff]
    %v757 = vsel %vm81, %v714, 0
    %v760 = vsel %vm81, %v719, 0
    %v763 = vsel %vm81, %v724, 0
    %v766 = vsel %vm81, %v729, 0
    %v769 = vsel %vm81, %v734, 0
    %v772 = vsel %vm81, %v739, 0
    %v775 = vsel %vm81, %v744, 0
    %v778 = vsel %vm81, %v749, 0
    %780 = vmatprep.subr.mxu0 0.0
    %781 = vmatpush1.msra.mxu0 %v752
    %782 = vmatprep.subr.mxu0 0.0
    %783 = vmatpush1.msra.mxu0 %v753
    %784 = vmatprep.subr.mxu0 0.0
    %785 = vmatpush1.msra.mxu0 %v754
    %786 = vmatprep.subr.mxu0 0.0
    %787 = vmatpush1.msra.mxu0 %v755
    %788 = vmatprep.subr.mxu0 0.0
    %789 = vmatpush1.msra.mxu0 0.0
    %790 = vmatprep.subr.mxu0 0.0
    %791 = vmatpush1.msra.mxu0 0.0
    %792 = vmatprep.subr.mxu0 0.0
    %793 = vmatpush1.msra.mxu0 0.0
    %794 = vmatprep.subr.mxu0 0.0
    %795 = vmatpush1.msra.mxu0 0.0
    %796 = vmatprep.subr.mxu0 0.0
    %797 = vmatpush1.msra.mxu0 0.0
    %798 = vmatprep.subr.mxu0 0.0
    %799 = vmatpush1.msra.mxu0 0.0
    %800 = vmatprep.subr.mxu0 0.0
    %801 = vmatpush1.msra.mxu0 0.0
    %802 = vmatprep.subr.mxu0 0.0
    %803 = vmatpush1.msra.mxu0 0.0
    %804 = vmatprep.subr.mxu0 0.0
    %805 = vmatpush1.msra.mxu0 0.0
    %806 = vmatprep.subr.mxu0 0.0
    %807 = vmatpush1.msra.mxu0 0.0
    %808 = vmatprep.subr.mxu0 0.0
    %809 = vmatpush1.msra.mxu0 0.0
    %810 = vmatprep.subr.mxu0 0.0
    %811 = vmatpush1.msra.mxu0 0.0
    %812 = vmatprep.subr.mxu0 0.0
    %813 = vmatpush1.msra.mxu0 0.0
    %814 = vmatprep.subr.mxu0 0.0
    %815 = vmatpush1.msra.mxu0 0.0
    %816 = vmatprep.subr.mxu0 0.0
    %817 = vmatpush1.msra.mxu0 0.0
    %818 = vmatprep.subr.mxu0 0.0
    %819 = vmatpush1.msra.mxu0 0.0
    %820 = vmatprep.subr.mxu0 0.0
    %821 = vmatpush1.msra.mxu0 0.0
    %822 = vmatprep.subr.mxu0 0.0
    %823 = vmatpush1.msra.mxu0 0.0
    %824 = vmatprep.subr.mxu0 0.0
    %825 = vmatpush1.msra.mxu0 0.0
    %826 = vmatprep.subr.mxu0 0.0
    %827 = vmatpush1.msra.mxu0 0.0
    %828 = vmatprep.subr.mxu0 0.0
    %829 = vmatpush1.msra.mxu0 0.0
    %830 = vmatprep.subr.mxu0 0.0
    %831 = vmatpush1.msra.mxu0 0.0
    %832 = vmatprep.subr.mxu0 0.0
    %833 = vmatpush1.msra.mxu0 0.0
    %834 = vmatprep.subr.mxu0 0.0
    %835 = vmatpush1.msra.mxu0 0.0
    %836 = vmatprep.subr.mxu0 0.0
    %837 = vmatpush1.msra.mxu0 0.0
    %838 = vmatprep.subr.mxu0 0.0
    %839 = vmatpush1.msra.mxu0 0.0
    %840 = vmatprep.subr.mxu0 0.0
    %841 = vmatpush1.msra.mxu0 0.0
    %842 = vmatprep.subr.mxu0 0.0
    %843 = vmatpush1.msra.mxu0 0.0
    %844 = vmatprep.mubr.f32.mxu0 0.0
    %845 = vmatmul.mubr.f32.gmra.mrb[0].mxu0 %v757
    %v846 = vpop.f32.mrb[0].mxu0
    %v847 = vadd.f32 0.0, %v846
    %v848 = vpop.f32.mrb[0].mxu0
    %849 = vmatprep.mubr.f32.mxu0 0.0
    %850 = vmatmul.mubr.f32.gmra.mrb[0].mxu0 %v760
    %v851 = vpop.f32.mrb[0].mxu0
    %v852 = vadd.f32 0.0, %v851
    %v853 = vpop.f32.mrb[0].mxu0
    %854 = vmatprep.mubr.f32.mxu0 0.0
    %855 = vmatmul.mubr.f32.gmra.mrb[0].mxu0 %v763
    %v856 = vpop.f32.mrb[0].mxu0
    %v857 = vadd.f32 0.0, %v856
    %v858 = vpop.f32.mrb[0].mxu0
    %859 = vmatprep.mubr.f32.mxu0 0.0
    %860 = vmatmul.mubr.f32.gmra.mrb[0].mxu0 %v766
    %v861 = vpop.f32.mrb[0].mxu0
    %v862 = vadd.f32 0.0, %v861
    %v863 = vpop.f32.mrb[0].mxu0
    %864 = vmatprep.mubr.f32.mxu0 0.0
    %865 = vmatmul.mubr.f32.gmra.mrb[0].mxu0 %v769
    %v866 = vpop.f32.mrb[0].mxu0
    %v867 = vadd.f32 0.0, %v866
    %v868 = vpop.f32.mrb[0].mxu0
    %869 = vmatprep.mubr.f32.mxu0 0.0
    %870 = vmatmul.mubr.f32.gmra.mrb[0].mxu0 %v772
    %v871 = vpop.f32.mrb[0].mxu0
    %v872 = vadd.f32 0.0, %v871
    %v873 = vpop.f32.mrb[0].mxu0
    %874 = vmatprep.mubr.f32.mxu0 0.0
    %875 = vmatmul.mubr.f32.gmra.mrb[0].mxu0 %v775
    %v876 = vpop.f32.mrb[0].mxu0
    %v877 = vadd.f32 0.0, %v876
    %v878 = vpop.f32.mrb[0].mxu0
    %879 = vmatprep.mubr.f32.mxu0 0.0
    %880 = vmatmul.mubr.f32.gmra.mrb[0].mxu0 %v778
    %v881 = vpop.f32.mrb[0].mxu0
    %v882 = vadd.f32 0.0, %v881
    %v883 = vpop.f32.mrb[0].mxu0
    %884 = vdwg.mxu0
    %v885 = vadd.f32 %v847, %v857
    %v886 = vadd.f32 %v852, %v862
    %v887 = vadd.f32 %v885, %v867
    %v888 = vadd.f32 %v886, %v872
    %v889 = vadd.f32 %v887, %v877
    %v890 = vadd.f32 %v888, %v882
    %v891 = vld [vmem:[%s4] sm:$0x1]
    %v893 = vlaneseq
    %v894 = vshrl.u32 %v893, 7
    %v895 = vsub.s32 0, %v894
    %v896 = vrot.slane %v891, %v895
    %v898 = vadd.f32 %v889, %v896
    %v899 = vadd.f32 %v890, %v896
    %900 = vst.msk [vmem:[#allocation8] sm:$0xff] %vm81, %v898
    %901 = vst.msk [vmem:[#allocation8 + $0x8] sm:$0xff] %vm81, %v899
    // Predicated region
    $region42: #{tpu_custom_call.1} parent=1 // pred_check
      _
    $region43: #{tpu_custom_call.1} parent=1 // pred_check_branch
      %903 = sbr.rel (0) target = $region45
    $region44: #{tpu_custom_call.1} parent=1 // pred_region
      %s905 = ssub.s32 256, 256
      %906 = vsyncadd [#allocation4], %s905
      %s907 = sshll.u32 [#allocation8], 4
      %s908 = int_to_ptr.vmem [resolvable:$true] %s907
      %913 = dma.vmem_to_hbm [thread:$0]  %s908, 256, %s7, [#allocation4], 128, 128, 8
    $region45: #{tpu_custom_call.1} parent=1 // pred_fallthru
      _
    // Predicated region
    $region46: #{tpu_custom_call.1} parent=1 // pred_check
      _
    $region47: #{tpu_custom_call.1} parent=1 // pred_check_branch
      %915 = sbr.rel (0) target = $region49
    $region48: #{tpu_custom_call.1} parent=1 // pred_region
      %916 = dma.done [#allocation4], 256
    $region49: #{tpu_custom_call.1} parent=1 // pred_fallthru
      _
    %917 = vsyncpa [#allocation3], 1
    %918 = vsyncpa [#allocation6], 1
    %919 = vsyncpa [#allocation4], 1

</llo_original>
